<compile_context>
chip_gen: v7x
topology: tpu7x:2x2x1
jax: 0.10.0
libtpu: 0.0.40
codegen_flags: <defaults>
</compile_context>

<pallas_src>
import functools
from typing import NamedTuple

import jax
import jax.numpy as jnp
from jax import lax
from jax.experimental import pallas as pl
from jax.experimental.pallas import tpu as pltpu


_LANE = 128
_VMEM_LIMIT_BYTES = 32 * 1024 * 1024      # portable across v5e / v6e / v7x
_H_RESIDENT_MAX_BYTES = 4 * 1024 * 1024   # H bytes gate (x2 buffers <= 8 MiB)
_FUSE_MAX_NODES = 512                     # fully-fused single-kernel path gate


def _round_up(x, m):
    return ((x + m - 1) // m) * m


# ----------------------------- kernels --------------------------------------


def _fused_sgc_kernel(a_ref, x_ref, w_ref, o_ref, h0_ref, h1_ref, *, num_hops):
    """Small-graph path: all K hops + projection in one kernel.

    A, X, W are VMEM-resident; H ping-pongs between two bf16 VMEM scratch
    buffers; every MXU dot accumulates in f32.
    """
    h0_ref[...] = x_ref[...]
    bufs = (h0_ref, h1_ref)
    for hop in range(num_hops):          # num_hops is a static Python int
        src = bufs[hop % 2]
        dst = bufs[(hop + 1) % 2]
        dst[...] = jnp.dot(
            a_ref[...], src[...], preferred_element_type=jnp.float32
        ).astype(jnp.bfloat16)
    h_last = bufs[num_hops % 2]
    o_ref[...] = jnp.dot(
        h_last[...], w_ref[...], preferred_element_type=jnp.float32
    )


def _hop_kernel(a_ref, h_ref, o_ref, acc_ref, *, tk, h_resident):
    """One propagation hop: O[i, :] = sum_k A[i, k] @ H[k, :] (bf16 in, f32 acc)."""
    k = pl.program_id(1)

    @pl.when(k == 0)
    def _():
        acc_ref[...] = jnp.zeros_like(acc_ref)

    if h_resident:
        start = pl.multiple_of(k * tk, tk)
        h_blk = h_ref[pl.ds(start, tk), :]
    else:
        h_blk = h_ref[...]

    acc_ref[...] += jnp.dot(a_ref[...], h_blk, preferred_element_type=jnp.float32)

    @pl.when(k == pl.num_programs(1) - 1)
    def _():
        o_ref[...] = acc_ref[...].astype(o_ref.dtype)


def _hop_project_kernel(a_ref, h_ref, w_ref, o_ref, acc_ref, *, tk, h_resident):
    """Last hop fused with the linear projection: O[i,:] = (A[i,:] @ H) @ W."""
    k = pl.program_id(1)

    @pl.when(k == 0)
    def _():
        acc_ref[...] = jnp.zeros_like(acc_ref)

    if h_resident:
        start = pl.multiple_of(k * tk, tk)
        h_blk = h_ref[pl.ds(start, tk), :]
    else:
        h_blk = h_ref[...]

    acc_ref[...] += jnp.dot(a_ref[...], h_blk, preferred_element_type=jnp.float32)

    @pl.when(k == pl.num_programs(1) - 1)
    def _():
        # bf16 x bf16 MXU (single pass) with f32 output.
        o_ref[...] = jnp.dot(
            acc_ref[...].astype(jnp.bfloat16),
            w_ref[...],
            preferred_element_type=jnp.float32,
        )


# --------------------------- pallas wrappers ---------------------------------


def _fused_forward(a_p, x_p, w_p, *, num_hops):
    n_pad, f_pad = x_p.shape
    c_pad = w_p.shape[1]
    kernel = functools.partial(_fused_sgc_kernel, num_hops=num_hops)
    return pl.pallas_call(
        kernel,
        out_shape=jax.ShapeDtypeStruct((n_pad, c_pad), jnp.float32),
        grid_spec=pltpu.PrefetchScalarGridSpec(
            num_scalar_prefetch=0,
            grid=(1,),
            in_specs=[
                pl.BlockSpec((n_pad, n_pad), lambda i: (0, 0)),   # A (resident)
                pl.BlockSpec((n_pad, f_pad), lambda i: (0, 0)),   # X (resident)
                pl.BlockSpec((f_pad, c_pad), lambda i: (0, 0)),   # W (resident)
            ],
            out_specs=pl.BlockSpec((n_pad, c_pad), lambda i: (0, 0)),
            scratch_shapes=[
                pltpu.VMEM((n_pad, f_pad), jnp.bfloat16),
                pltpu.VMEM((n_pad, f_pad), jnp.bfloat16),
            ],
        ),
        compiler_params=pltpu.CompilerParams(
            dimension_semantics=("arbitrary",),
            vmem_limit_bytes=_VMEM_LIMIT_BYTES,
        ),
    )(a_p, x_p, w_p)


def _h_spec(n_pad, f_pad, tk, h_resident):
    if h_resident:
        # Constant block index -> DMA'd once, stays in VMEM for the whole grid.
        return pl.BlockSpec((n_pad, f_pad), lambda i, k: (0, 0))
    return pl.BlockSpec((tk, f_pad), lambda i, k: (k, 0))


def _tiled_hop(a_p, h, *, tm, tk, h_resident):
    n_pad = a_p.shape[0]
    f_pad = h.shape[1]
    kernel = functools.partial(_hop_kernel, tk=tk, h_resident=h_resident)
    return pl.pallas_call(
        kernel,
        out_shape=jax.ShapeDtypeStruct((n_pad, f_pad), jnp.bfloat16),
        grid_spec=pltpu.PrefetchScalarGridSpec(
            num_scalar_prefetch=0,
            grid=(n_pad // tm, n_pad // tk),
            in_specs=[
                pl.BlockSpec((tm, tk), lambda i, k: (i, k)),   # A tile (streamed)
                _h_spec(n_pad, f_pad, tk, h_resident),         # H
            ],
            out_specs=pl.BlockSpec((tm, f_pad), lambda i, k: (i, 0)),
            scratch_shapes=[pltpu.VMEM((tm, f_pad), jnp.float32)],
        ),
        compiler_params=pltpu.CompilerParams(
            dimension_semantics=("parallel", "arbitrary"),
            vmem_limit_bytes=_VMEM_LIMIT_BYTES,
        ),
    )(a_p, h)


def _tiled_hop_project(a_p, h, w_p, *, tm, tk, h_resident):
    n_pad = a_p.shape[0]
    f_pad = h.shape[1]
    c_pad = w_p.shape[1]
    kernel = functools.partial(_hop_project_kernel, tk=tk, h_resident=h_resident)
    return pl.pallas_call(
        kernel,
        out_shape=jax.ShapeDtypeStruct((n_pad, c_pad), jnp.float32),
        grid_spec=pltpu.PrefetchScalarGridSpec(
            num_scalar_prefetch=0,
            grid=(n_pad // tm, n_pad // tk),
            in_specs=[
                pl.BlockSpec((tm, tk), lambda i, k: (i, k)),   # A tile (streamed)
                _h_spec(n_pad, f_pad, tk, h_resident),         # H
                pl.BlockSpec((f_pad, c_pad), lambda i, k: (0, 0)),  # W (resident)
            ],
            out_specs=pl.BlockSpec((tm, c_pad), lambda i, k: (i, 0)),
            scratch_shapes=[pltpu.VMEM((tm, f_pad), jnp.float32)],
        ),
        compiler_params=pltpu.CompilerParams(
            dimension_semantics=("parallel", "arbitrary"),
            vmem_limit_bytes=_VMEM_LIMIT_BYTES,
        ),
    )(a_p, h, w_p)


# --------------------------- setup + forward ---------------------------------


class SGCOperands(NamedTuple):
    a_p: jax.Array     # (n_pad, n_pad) bf16 normalized adjacency, zero-padded
    x_p: jax.Array     # (n_pad, f_pad) bf16 features, zero-padded
    w_p: jax.Array     # (f_pad, c_pad) bf16 weight, zero-padded
    n: int
    c: int
    tm: int
    tk: int
    fused: bool
    h_resident: bool


def prepare_sgc_operands(a_hat, x, w, *, tile=512,
                         fuse_max_nodes=_FUSE_MAX_NODES,
                         h_resident_max_bytes=_H_RESIDENT_MAX_BYTES):
    """One-time setup: pad + cast operands (hoisted out of the per-call path)."""
    assert tile % _LANE == 0
    n, f = x.shape
    f2, c = w.shape
    assert f2 == f

    f_pad = _round_up(f, _LANE)
    c_pad = _round_up(c, _LANE)

    fused = n <= fuse_max_nodes
    if fused:
        n_pad = _round_up(n, _LANE)
        tm = tk = n_pad
        h_resident = True
    else:
        tm = tk = min(tile, _round_up(n, _LANE))
        n_pad = _round_up(n, tm)
        h_resident = (n_pad * f_pad * 2) <= h_resident_max_bytes

    a_p = jnp.zeros((n_pad, n_pad), jnp.bfloat16).at[:n, :n].set(
        a_hat.astype(jnp.bfloat16))
    x_p = jnp.zeros((n_pad, f_pad), jnp.bfloat16).at[:n, :f].set(
        x.astype(jnp.bfloat16))
    w_p = jnp.zeros((f_pad, c_pad), jnp.bfloat16).at[:f, :c].set(
        w.astype(jnp.bfloat16))
    return SGCOperands(a_p, x_p, w_p, n, c, tm, tk, fused, h_resident)


def sgc_forward(ops: SGCOperands, *, num_layers):
    """SGC forward: K hops of A_hat @ H, then H @ W. Returns (N, C) f32 logits."""
    assert num_layers >= 1, "SGConv uses K >= 1"
    if ops.fused:
        out_p = _fused_forward(ops.a_p, ops.x_p, ops.w_p, num_hops=num_layers)
    else:
        h = ops.x_p
        for _ in range(num_layers - 1):
            h = _tiled_hop(ops.a_p, h, tm=ops.tm, tk=ops.tk,
                           h_resident=ops.h_resident)
        out_p = _tiled_hop_project(ops.a_p, h, ops.w_p, tm=ops.tm, tk=ops.tk,
                                   h_resident=ops.h_resident)
    return out_p[:ops.n, :ops.c]


# --------------------------- plain-JAX glue ----------------------------------


def gcn_norm_dense(edge_index, num_nodes):
    """Densify edge_index and apply symmetric GCN normalization
    D^{-1/2} A D^{-1/2} (add_self_loops=False)."""
    src, dst = edge_index
    a = jnp.zeros((num_nodes, num_nodes), jnp.float32)
    a = a.at[dst, src].set(1.0)
    a = jnp.maximum(a, a.T)  # undirected graph
    deg = a.sum(axis=1)
    dinv = jnp.where(deg > 0, lax.rsqrt(deg), 0.0)
    return dinv[:, None] * a * dinv[None, :]


def reference_sgc_f32(a_hat, x, w, num_layers):
    h = x
    for _ in range(num_layers):
        h = a_hat @ h
    return h @ w


def reference_sgc_mixed(a_hat, x, w, num_layers):
    """Mirrors the kernel's precision: bf16 A/H/W MXU inputs, f32 accumulation,
    bf16 intermediate hops, f32 output."""
    a = a_hat.astype(jnp.bfloat16)
    h = x.astype(jnp.bfloat16)
    for _ in range(num_layers):
        h = jnp.dot(a, h, preferred_element_type=jnp.float32).astype(jnp.bfloat16)
    return jnp.dot(h, w.astype(jnp.bfloat16), preferred_element_type=jnp.float32)


# ------------------------------- demo ----------------------------------------


if __name__ == "__main__":
    num_feats = 32
    num_classes = 8
    num_layers = 2          # K in SGConv

    def make_problem(key, num_nodes, num_edges):
        k_x, k_w, k_src, k_dst = jax.random.split(key, 4)
        x = jax.random.normal(k_x, (num_nodes, num_feats), dtype=jnp.float32)
        src = jax.random.randint(k_src, (num_edges,), 0, num_nodes)
        dst = jax.random.randint(k_dst, (num_edges,), 0, num_nodes)
        a_hat = gcn_norm_dense(jnp.stack([src, dst], axis=0), num_nodes)
        limit = (6.0 / (num_feats + num_classes)) ** 0.5
        w = jax.random.uniform(
            k_w, (num_feats, num_classes), jnp.float32, -limit, limit)
        return a_hat, x, w

    def run_and_check(a_hat, x, w, **prep_kwargs):
        ops = prepare_sgc_operands(a_hat, x, w, **prep_kwargs)
        out = sgc_forward(ops, num_layers=num_layers)
        out = jax.block_until_ready(out)
        assert out.shape == (x.shape[0], num_classes)
        ref_mixed = reference_sgc_mixed(a_hat, x, w, num_layers)
        ref_f32 = reference_sgc_f32(a_hat, x, w, num_layers)
        assert jnp.allclose(out, ref_mixed, atol=3e-2, rtol=3e-2), (
            "mismatch vs mixed-precision reference")
        assert jnp.allclose(out, ref_f32, atol=8e-2, rtol=8e-2), (
            "mismatch vs f32 reference")
        return out

    key = jax.random.PRNGKey(0)
    k_small, k_big = jax.random.split(key)

    # 1) Small graph -> fully-fused single-kernel path (A/X/W VMEM-resident).
    run_and_check(*make_problem(k_small, 64, 256))

    # 2) Larger graph -> tiled path, 512-wide A tiles, VMEM-resident H,
    #    row grid >= 2 so both v7x TensorCores get work.
    big = make_problem(k_big, 1024, 8192)
    run_and_check(*big)

    # 3) Same graph, forcing the streamed-H fallback (coverage of the path
    #    used when H would not fit the resident-H VMEM budget).
    run_and_check(*big, h_resident_max_bytes=0)

    print("KERNEL_OK")
</pallas_src>

<mosaic_0001>
module attributes {stable_mosaic.version = 11 : i64} {
  func.func @_fused_sgc_kernel(%arg0: i32, %arg1: memref<128x128xbf16, #tpu.memory_space<vmem>>, %arg2: memref<128x128xbf16, #tpu.memory_space<vmem>>, %arg3: memref<128x128xbf16, #tpu.memory_space<vmem>>, %arg4: memref<128x128xf32, #tpu.memory_space<vmem>>, %arg5: memref<128x128xbf16, #tpu.memory_space<vmem>>, %arg6: memref<128x128xbf16, #tpu.memory_space<vmem>>) attributes {dimension_semantics = [#tpu.dimension_semantics<arbitrary>], iteration_bounds = array<i64: 1>, scalar_prefetch = 0 : i64, scratch_operands = 2 : i64, tpu.core_type = #tpu.core_type<tc>, window_params = [{pipeline_mode = #tpu.pipeline_mode<synchronous>, transform_indices = @transform_0, window_bounds = array<i64: 128, 128>}, {pipeline_mode = #tpu.pipeline_mode<synchronous>, transform_indices = @transform_1, window_bounds = array<i64: 128, 128>}, {pipeline_mode = #tpu.pipeline_mode<synchronous>, transform_indices = @transform_2, window_bounds = array<i64: 128, 128>}, {pipeline_mode = #tpu.pipeline_mode<synchronous>, transform_indices = @transform_3, window_bounds = array<i64: 128, 128>}]} {
    %c0 = arith.constant 0 : index
    %c0_0 = arith.constant 0 : index
    %0 = vector.load %arg2[%c0, %c0_0] : memref<128x128xbf16, #tpu.memory_space<vmem>>, vector<128x128xbf16>
    %c0_1 = arith.constant 0 : index
    %c0_2 = arith.constant 0 : index
    %1 = vector.load %arg5[%c0_1, %c0_2] : memref<128x128xbf16, #tpu.memory_space<vmem>>, vector<128x128xbf16>
    tpu.vector_store %arg5[%c0_1, %c0_2], %0 {strides = array<i32>} : memref<128x128xbf16, #tpu.memory_space<vmem>>, vector<128x128xbf16>,
    %c0_3 = arith.constant 0 : index
    %c0_4 = arith.constant 0 : index
    %2 = vector.load %arg1[%c0_3, %c0_4] : memref<128x128xbf16, #tpu.memory_space<vmem>>, vector<128x128xbf16>
    %c0_5 = arith.constant 0 : index
    %c0_6 = arith.constant 0 : index
    %3 = vector.load %arg5[%c0_5, %c0_6] : memref<128x128xbf16, #tpu.memory_space<vmem>>, vector<128x128xbf16>
    %cst = arith.constant dense<0.000000e+00> : vector<128x128xf32>
    %4 = tpu.matmul %2, %3, %cst {dimension_numbers = #tpu.dot_dimension_numbers<[1], [0], [0], [1], [0, 0, 1, 1], [], []>} : vector<128x128xbf16>, vector<128x128xbf16>, vector<128x128xf32> -> vector<128x128xf32>
    %5 = arith.truncf %4 : vector<128x128xf32> to vector<128x128xbf16>
    %c0_7 = arith.constant 0 : index
    %c0_8 = arith.constant 0 : index
    %6 = vector.load %arg6[%c0_7, %c0_8] : memref<128x128xbf16, #tpu.memory_space<vmem>>, vector<128x128xbf16>
    tpu.vector_store %arg6[%c0_7, %c0_8], %5 {strides = array<i32>} : memref<128x128xbf16, #tpu.memory_space<vmem>>, vector<128x128xbf16>,
    %c0_9 = arith.constant 0 : index
    %c0_10 = arith.constant 0 : index
    %7 = vector.load %arg1[%c0_9, %c0_10] : memref<128x128xbf16, #tpu.memory_space<vmem>>, vector<128x128xbf16>
    %c0_11 = arith.constant 0 : index
    %c0_12 = arith.constant 0 : index
    %8 = vector.load %arg6[%c0_11, %c0_12] : memref<128x128xbf16, #tpu.memory_space<vmem>>, vector<128x128xbf16>
    %cst_13 = arith.constant dense<0.000000e+00> : vector<128x128xf32>
    %9 = tpu.matmul %7, %8, %cst_13 {dimension_numbers = #tpu.dot_dimension_numbers<[1], [0], [0], [1], [0, 0, 1, 1], [], []>} : vector<128x128xbf16>, vector<128x128xbf16>, vector<128x128xf32> -> vector<128x128xf32>
    %10 = arith.truncf %9 : vector<128x128xf32> to vector<128x128xbf16>
    %c0_14 = arith.constant 0 : index
    %c0_15 = arith.constant 0 : index
    %11 = vector.load %arg5[%c0_14, %c0_15] : memref<128x128xbf16, #tpu.memory_space<vmem>>, vector<128x128xbf16>
    tpu.vector_store %arg5[%c0_14, %c0_15], %10 {strides = array<i32>} : memref<128x128xbf16, #tpu.memory_space<vmem>>, vector<128x128xbf16>,
    %c0_16 = arith.constant 0 : index
    %c0_17 = arith.constant 0 : index
    %12 = vector.load %arg5[%c0_16, %c0_17] : memref<128x128xbf16, #tpu.memory_space<vmem>>, vector<128x128xbf16>
    %c0_18 = arith.constant 0 : index
    %c0_19 = arith.constant 0 : index
    %13 = vector.load %arg3[%c0_18, %c0_19] : memref<128x128xbf16, #tpu.memory_space<vmem>>, vector<128x128xbf16>
    %cst_20 = arith.constant dense<0.000000e+00> : vector<128x128xf32>
    %14 = tpu.matmul %12, %13, %cst_20 {dimension_numbers = #tpu.dot_dimension_numbers<[1], [0], [0], [1], [0, 0, 1, 1], [], []>} : vector<128x128xbf16>, vector<128x128xbf16>, vector<128x128xf32> -> vector<128x128xf32>
    %c0_21 = arith.constant 0 : index
    %c0_22 = arith.constant 0 : index
    %15 = vector.load %arg4[%c0_21, %c0_22] : memref<128x128xf32, #tpu.memory_space<vmem>>, vector<128x128xf32>
    tpu.vector_store %arg4[%c0_21, %c0_22], %14 {strides = array<i32>} : memref<128x128xf32, #tpu.memory_space<vmem>>, vector<128x128xf32>,
    return
  }
  func.func @transform_0(%arg0: i32) -> (i32, i32) {
    %c0_i32 = arith.constant 0 : i32
    %c0_i32_0 = arith.constant 0 : i32
    %c0_i32_1 = arith.constant 0 : i32
    return %c0_i32, %c0_i32_0 : i32, i32
  }
  func.func @transform_1(%arg0: i32) -> (i32, i32) {
    %c0_i32 = arith.constant 0 : i32
    %c0_i32_0 = arith.constant 0 : i32
    %c0_i32_1 = arith.constant 0 : i32
    return %c0_i32, %c0_i32_0 : i32, i32
  }
  func.func @transform_2(%arg0: i32) -> (i32, i32) {
    %c0_i32 = arith.constant 0 : i32
    %c0_i32_0 = arith.constant 0 : i32
    %c0_i32_1 = arith.constant 0 : i32
    return %c0_i32, %c0_i32_0 : i32, i32
  }
  func.func @transform_3(%arg0: i32) -> (i32, i32) {
    %c0_i32 = arith.constant 0 : i32
    %c0_i32_0 = arith.constant 0 : i32
    %c0_i32_1 = arith.constant 0 : i32
    return %c0_i32, %c0_i32_0 : i32, i32
  }
}

</mosaic_0001>

<llo_original>
// kernel: tpu_custom_call.1
$region0: #{tpu_custom_call.1}
  #allocation0 [shape = 'u32[]', space=smem, size = 0x4, offset = 0x4, fixed_abs, tag = 'smem constant byte address 0x4 - core index']
  #allocation1 [shape = 'u32[144,128]{1,0:T(1,128)}', space=vmem, size = 0x12000, scoped, tag = 'internal scratch']
  #allocation2 [shape = 'bf16[128,128]{1,0:T(16,128)(2,1)}', space=vmem, size = 0x8000, scoped, tag = 'scratch operand']
  #allocation3 [shape = 'bf16[128,128]{1,0:T(16,128)(2,1)}', space=vmem, size = 0x8000, scoped, tag = 'scratch operand']
  %s0 = inlined_call_operand.hbm [shape: bf16[128,128], index: 0, kind: input, shape index: {}]
  %s1 = inlined_call_operand.hbm [shape: bf16[128,128], index: 1, kind: input, shape index: {}]
  %s2 = inlined_call_operand.hbm [shape: bf16[128,128], index: 2, kind: input, shape index: {}]
  %s3 = inlined_call_operand.hbm [shape: f32[128,128], index: 3, kind: output, shape index: {}]
  %s4 = sld [smem:[#allocation0]]
  $region34: #{tpu_custom_call.1} parent=0
    _
  %s6 = ssub.s32 1, %s4
  %s7 = scalar_select 0, %s6, %s4
  $region1: #{tpu_custom_call.1} parent=0
    #allocation4 [shape = 'u8[32768]{0}', space=vmem, size = 0x8000, scoped, tag = 'input window, operand 0, single buffered']
    #allocation5 [shape = 's32[1]{0}', space=sflag, size = 0x4, scoped, tag = 'scoped memory for tpu_custom_call.1']
    #allocation6 [shape = 's32[1]{0}', space=sflag, size = 0x4, scoped, tag = 'scoped memory for tpu_custom_call.1']
    #allocation7 [shape = 'u8[32768]{0}', space=vmem, size = 0x8000, scoped, tag = 'input window, operand 1, single buffered']
    #allocation8 [shape = 's32[1]{0}', space=sflag, size = 0x4, scoped, tag = 'scoped memory for tpu_custom_call.1']
    #allocation9 [shape = 'u8[32768]{0}', space=vmem, size = 0x8000, scoped, tag = 'input window, operand 2, single buffered']
    #allocation10 [shape = 'u8[65536]{0}', space=vmem, size = 0x10000, scoped, tag = 'output window, operand 0, single buffered']
    %8 = vsyncpa [#allocation5], 0
    %9 = vsyncpa [#allocation8], 0
    %10 = vsyncpa [#allocation6], 0
    // Predicated region
    $region2: #{tpu_custom_call.1} parent=1 // pred_check
      _
    $region3: #{tpu_custom_call.1} parent=1 // pred_check_branch
      %12 = sbr.rel (0) target = $region5
    $region4: #{tpu_custom_call.1} parent=1 // pred_region
      %s14 = ssub.s32 1024, 1024
      %15 = vsyncadd [#allocation5], %s14
      %s16 = sshll.u32 [#allocation4], 4
      %s17 = int_to_ptr.vmem [resolvable:$true] %s16
      %22 = dma.hbm_to_vmem [thread:$0]  %s0, 1024, %s17, [#allocation5], 64, 64, 4
    $region5: #{tpu_custom_call.1} parent=1 // pred_fallthru
      _
    // Predicated region
    $region6: #{tpu_custom_call.1} parent=1 // pred_check
      _
    $region7: #{tpu_custom_call.1} parent=1 // pred_check_branch
      %24 = sbr.rel (0) target = $region9
    $region8: #{tpu_custom_call.1} parent=1 // pred_region
      %s26 = ssub.s32 1024, 1024
      %27 = vsyncadd [#allocation8], %s26
      %s28 = sshll.u32 [#allocation7], 4
      %s29 = int_to_ptr.vmem [resolvable:$true] %s28
      %34 = dma.hbm_to_vmem [thread:$0]  %s1, 1024, %s29, [#allocation8], 64, 64, 4
    $region9: #{tpu_custom_call.1} parent=1 // pred_fallthru
      _
    // Predicated region
    $region10: #{tpu_custom_call.1} parent=1 // pred_check
      _
    $region11: #{tpu_custom_call.1} parent=1 // pred_check_branch
      %36 = sbr.rel (0) target = $region13
    $region12: #{tpu_custom_call.1} parent=1 // pred_region
      %s38 = ssub.s32 1024, 1024
      %39 = vsyncadd [#allocation8], %s38
      %s40 = sshll.u32 [#allocation9], 4
      %s41 = int_to_ptr.vmem [resolvable:$true] %s40
      %46 = dma.hbm_to_vmem [thread:$0]  %s2, 1024, %s41, [#allocation8], 64, 64, 4
    $region13: #{tpu_custom_call.1} parent=1 // pred_fallthru
      _
    // Predicated region
    $region14: #{tpu_custom_call.1} parent=1 // pred_check
      _
    $region15: #{tpu_custom_call.1} parent=1 // pred_check_branch
      %48 = sbr.rel (0) target = $region17
    $region16: #{tpu_custom_call.1} parent=1 // pred_region
      %49 = dma.done [#allocation5], 1024
    $region17: #{tpu_custom_call.1} parent=1 // pred_fallthru
      _
    // Predicated region
    $region18: #{tpu_custom_call.1} parent=1 // pred_check
      _
    $region19: #{tpu_custom_call.1} parent=1 // pred_check_branch
      %51 = sbr.rel (0) target = $region21
    $region20: #{tpu_custom_call.1} parent=1 // pred_region
      %52 = dma.done [#allocation8], 1024
    $region21: #{tpu_custom_call.1} parent=1 // pred_fallthru
      _
    // Predicated region
    $region22: #{tpu_custom_call.1} parent=1 // pred_check
      _
    $region23: #{tpu_custom_call.1} parent=1 // pred_check_branch
      %54 = sbr.rel (0) target = $region25
    $region24: #{tpu_custom_call.1} parent=1 // pred_region
      %55 = dma.done [#allocation8], 1024
    $region25: #{tpu_custom_call.1} parent=1 // pred_fallthru
      _
    %v57 = vld [vmem:[#allocation7] sm:$0xf]
    %v58 = vld [vmem:[#allocation7 + $0x4] sm:$0xf]
    %v59 = vld [vmem:[#allocation7 + $0x8] sm:$0xf]
    %v60 = vld [vmem:[#allocation7 + $0xc] sm:$0xf]
    %v61 = vld [vmem:[#allocation7 + $0x10] sm:$0xf]
    %v62 = vld [vmem:[#allocation7 + $0x14] sm:$0xf]
    %v63 = vld [vmem:[#allocation7 + $0x18] sm:$0xf]
    %v64 = vld [vmem:[#allocation7 + $0x1c] sm:$0xf]
    %v65 = vld [vmem:[#allocation7 + $0x20] sm:$0xf]
    %v66 = vld [vmem:[#allocation7 + $0x24] sm:$0xf]
    %v67 = vld [vmem:[#allocation7 + $0x28] sm:$0xf]
    %v68 = vld [vmem:[#allocation7 + $0x2c] sm:$0xf]
    %v69 = vld [vmem:[#allocation7 + $0x30] sm:$0xf]
    %v70 = vld [vmem:[#allocation7 + $0x34] sm:$0xf]
    %v71 = vld [vmem:[#allocation7 + $0x38] sm:$0xf]
    %v72 = vld [vmem:[#allocation7 + $0x3c] sm:$0xf]
    %v89 = vunpack.c.l.b16 %v57
    %v90 = vunpack.c.l.b16 %v58
    %v91 = vunpack.c.l.b16 %v59
    %v92 = vunpack.c.l.b16 %v60
    %v93 = vunpack.c.l.b16 %v61
    %v94 = vunpack.c.l.b16 %v62
    %v95 = vunpack.c.l.b16 %v63
    %v96 = vunpack.c.l.b16 %v64
    %v97 = vunpack.c.l.b16 %v65
    %v98 = vunpack.c.l.b16 %v66
    %v99 = vunpack.c.l.b16 %v67
    %v100 = vunpack.c.l.b16 %v68
    %v101 = vunpack.c.l.b16 %v69
    %v102 = vunpack.c.l.b16 %v70
    %v103 = vunpack.c.l.b16 %v71
    %v104 = vunpack.c.l.b16 %v72
    %v105 = vpack.c.b16 %v90, %v89
    %v106 = vpack.c.b16 %v92, %v91
    %v107 = vpack.c.b16 %v94, %v93
    %v108 = vpack.c.b16 %v96, %v95
    %v109 = vpack.c.b16 %v98, %v97
    %v110 = vpack.c.b16 %v100, %v99
    %v111 = vpack.c.b16 %v102, %v101
    %v112 = vpack.c.b16 %v104, %v103
    %121 = vst [vmem:[#allocation2] sm:$0xff] %v105
    %122 = vst [vmem:[#allocation2 + $0x8] sm:$0xff] %v106
    %123 = vst [vmem:[#allocation2 + $0x10] sm:$0xff] %v107
    %124 = vst [vmem:[#allocation2 + $0x18] sm:$0xff] %v108
    %125 = vst [vmem:[#allocation2 + $0x20] sm:$0xff] %v109
    %126 = vst [vmem:[#allocation2 + $0x28] sm:$0xff] %v110
    %127 = vst [vmem:[#allocation2 + $0x30] sm:$0xff] %v111
    %128 = vst [vmem:[#allocation2 + $0x38] sm:$0xff] %v112
    %v129 = vld [vmem:[#allocation4] sm:$0xf]
    %v130 = vld [vmem:[#allocation4 + $0x4] sm:$0xf]
    %v131 = vld [vmem:[#allocation4 + $0x8] sm:$0xf]
    %v132 = vld [vmem:[#allocation4 + $0xc] sm:$0xf]
    %v133 = vld [vmem:[#allocation4 + $0x10] sm:$0xf]
    %v134 = vld [vmem:[#allocation4 + $0x14] sm:$0xf]
    %v135 = vld [vmem:[#allocation4 + $0x18] sm:$0xf]
    %v136 = vld [vmem:[#allocation4 + $0x1c] sm:$0xf]
    %v137 = vld [vmem:[#allocation4 + $0x20] sm:$0xf]
    %v138 = vld [vmem:[#allocation4 + $0x24] sm:$0xf]
    %v139 = vld [vmem:[#allocation4 + $0x28] sm:$0xf]
    %v140 = vld [vmem:[#allocation4 + $0x2c] sm:$0xf]
    %v141 = vld [vmem:[#allocation4 + $0x30] sm:$0xf]
    %v142 = vld [vmem:[#allocation4 + $0x34] sm:$0xf]
    %v143 = vld [vmem:[#allocation4 + $0x38] sm:$0xf]
    %v144 = vld [vmem:[#allocation4 + $0x3c] sm:$0xf]
    %v145 = vld [vmem:[#allocation2] sm:$0xff]
    %v146 = vld [vmem:[#allocation2 + $0x8] sm:$0xff]
    %v147 = vld [vmem:[#allocation2 + $0x10] sm:$0xff]
    %v148 = vld [vmem:[#allocation2 + $0x18] sm:$0xff]
    %v149 = vld [vmem:[#allocation2 + $0x20] sm:$0xff]
    %v150 = vld [vmem:[#allocation2 + $0x28] sm:$0xff]
    %v151 = vld [vmem:[#allocation2 + $0x30] sm:$0xff]
    %v152 = vld [vmem:[#allocation2 + $0x38] sm:$0xff]
    %v169 = vunpack.c.l.b16 %v129
    %v170 = vunpack.c.l.b16 %v130
    %v171 = vunpack.c.l.b16 %v131
    %v172 = vunpack.c.l.b16 %v132
    %v173 = vunpack.c.l.b16 %v133
    %v174 = vunpack.c.l.b16 %v134
    %v175 = vunpack.c.l.b16 %v135
    %v176 = vunpack.c.l.b16 %v136
    %v177 = vunpack.c.l.b16 %v137
    %v178 = vunpack.c.l.b16 %v138
    %v179 = vunpack.c.l.b16 %v139
    %v180 = vunpack.c.l.b16 %v140
    %v181 = vunpack.c.l.b16 %v141
    %v182 = vunpack.c.l.b16 %v142
    %v183 = vunpack.c.l.b16 %v143
    %v184 = vunpack.c.l.b16 %v144
    %v185 = vpack.c.b16 %v170, %v169
    %v186 = vpack.c.b16 %v172, %v171
    %v187 = vpack.c.b16 %v174, %v173
    %v188 = vpack.c.b16 %v176, %v175
    %v189 = vpack.c.b16 %v178, %v177
    %v190 = vpack.c.b16 %v180, %v179
    %v191 = vpack.c.b16 %v182, %v181
    %v192 = vpack.c.b16 %v184, %v183
    %201 = vmatprep.subr.bf16.mxu0 0
    %202 = vmatpush1.bf16.msra.mxu0 %v145
    %203 = vmatprep.subr.bf16.mxu0 0
    %204 = vmatpush1.bf16.msra.mxu0 %v146
    %205 = vmatprep.subr.bf16.mxu0 0
    %206 = vmatpush1.bf16.msra.mxu0 %v147
    %207 = vmatprep.subr.bf16.mxu0 0
    %208 = vmatpush1.bf16.msra.mxu0 %v148
    %209 = vmatprep.subr.bf16.mxu0 0
    %210 = vmatpush1.bf16.msra.mxu0 %v149
    %211 = vmatprep.subr.bf16.mxu0 0
    %212 = vmatpush1.bf16.msra.mxu0 %v150
    %213 = vmatprep.subr.bf16.mxu0 0
    %214 = vmatpush1.bf16.msra.mxu0 %v151
    %215 = vmatprep.subr.bf16.mxu0 0
    %216 = vmatpush1.bf16.msra.mxu0 %v152
    %217 = vmatprep.subr.bf16.mxu0 0
    %218 = vmatpush1.bf16.msra.mxu0 0
    %219 = vmatprep.subr.bf16.mxu0 0
    %220 = vmatpush1.bf16.msra.mxu0 0
    %221 = vmatprep.subr.bf16.mxu0 0
    %222 = vmatpush1.bf16.msra.mxu0 0
    %223 = vmatprep.subr.bf16.mxu0 0
    %224 = vmatpush1.bf16.msra.mxu0 0
    %225 = vmatprep.subr.bf16.mxu0 0
    %226 = vmatpush1.bf16.msra.mxu0 0
    %227 = vmatprep.subr.bf16.mxu0 0
    %228 = vmatpush1.bf16.msra.mxu0 0
    %229 = vmatprep.subr.bf16.mxu0 0
    %230 = vmatpush1.bf16.msra.mxu0 0
    %231 = vmatprep.subr.bf16.mxu0 0
    %232 = vmatpush1.bf16.msra.mxu0 0
    %233 = vmatprep.mubr.bf16.mxu0 0
    %234 = vmatmul.mubr.bf16.gmra.mrb[0].mxu0 %v185
    %v235 = vpop.f32.mrb[0].mxu0
    %v236 = vadd.f32 0.0, %v235
    %v237 = vpop.f32.mrb[0].mxu0
    %v238 = vpop.f32.mrb[0].mxu0
    %v239 = vadd.f32 0.0, %v238
    %v240 = vpop.f32.mrb[0].mxu0
    %241 = vmatprep.mubr.bf16.mxu0 0
    %242 = vmatmul.mubr.bf16.gmra.mrb[0].mxu0 %v186
    %v243 = vpop.f32.mrb[0].mxu0
    %v244 = vadd.f32 0.0, %v243
    %v245 = vpop.f32.mrb[0].mxu0
    %v246 = vpop.f32.mrb[0].mxu0
    %v247 = vadd.f32 0.0, %v246
    %v248 = vpop.f32.mrb[0].mxu0
    %249 = vmatprep.mubr.bf16.mxu0 0
    %250 = vmatmul.mubr.bf16.gmra.mrb[0].mxu0 %v187
    %v251 = vpop.f32.mrb[0].mxu0
    %v252 = vadd.f32 0.0, %v251
    %v253 = vpop.f32.mrb[0].mxu0
    %v254 = vpop.f32.mrb[0].mxu0
    %v255 = vadd.f32 0.0, %v254
    %v256 = vpop.f32.mrb[0].mxu0
    %257 = vmatprep.mubr.bf16.mxu0 0
    %258 = vmatmul.mubr.bf16.gmra.mrb[0].mxu0 %v188
    %v259 = vpop.f32.mrb[0].mxu0
    %v260 = vadd.f32 0.0, %v259
    %v261 = vpop.f32.mrb[0].mxu0
    %v262 = vpop.f32.mrb[0].mxu0
    %v263 = vadd.f32 0.0, %v262
    %v264 = vpop.f32.mrb[0].mxu0
    %265 = vmatprep.mubr.bf16.mxu0 0
    %266 = vmatmul.mubr.bf16.gmra.mrb[0].mxu0 %v189
    %v267 = vpop.f32.mrb[0].mxu0
    %v268 = vadd.f32 0.0, %v267
    %v269 = vpop.f32.mrb[0].mxu0
    %v270 = vpop.f32.mrb[0].mxu0
    %v271 = vadd.f32 0.0, %v270
    %v272 = vpop.f32.mrb[0].mxu0
    %273 = vmatprep.mubr.bf16.mxu0 0
    %274 = vmatmul.mubr.bf16.gmra.mrb[0].mxu0 %v190
    %v275 = vpop.f32.mrb[0].mxu0
    %v276 = vadd.f32 0.0, %v275
    %v277 = vpop.f32.mrb[0].mxu0
    %v278 = vpop.f32.mrb[0].mxu0
    %v279 = vadd.f32 0.0, %v278
    %v280 = vpop.f32.mrb[0].mxu0
    %281 = vmatprep.mubr.bf16.mxu0 0
    %282 = vmatmul.mubr.bf16.gmra.mrb[0].mxu0 %v191
    %v283 = vpop.f32.mrb[0].mxu0
    %v284 = vadd.f32 0.0, %v283
    %v285 = vpop.f32.mrb[0].mxu0
    %v286 = vpop.f32.mrb[0].mxu0
    %v287 = vadd.f32 0.0, %v286
    %v288 = vpop.f32.mrb[0].mxu0
    %289 = vmatprep.mubr.bf16.mxu0 0
    %290 = vmatmul.mubr.bf16.gmra.mrb[0].mxu0 %v192
    %v291 = vpop.f32.mrb[0].mxu0
    %v292 = vadd.f32 0.0, %v291
    %v293 = vpop.f32.mrb[0].mxu0
    %v294 = vpop.f32.mrb[0].mxu0
    %v295 = vadd.f32 0.0, %v294
    %v296 = vpop.f32.mrb[0].mxu0
    %297 = vdwg.mxu0
    %v298 = vpack.c.bf16 %v239, %v236
    %v299 = vpack.c.bf16 %v247, %v244
    %v300 = vpack.c.bf16 %v255, %v252
    %v301 = vpack.c.bf16 %v263, %v260
    %v302 = vpack.c.bf16 %v271, %v268
    %v303 = vpack.c.bf16 %v279, %v276
    %v304 = vpack.c.bf16 %v287, %v284
    %v305 = vpack.c.bf16 %v295, %v292
    %306 = vst [vmem:[#allocation3] sm:$0xff] %v298
    %307 = vst [vmem:[#allocation3 + $0x8] sm:$0xff] %v299
    %308 = vst [vmem:[#allocation3 + $0x10] sm:$0xff] %v300
    %309 = vst [vmem:[#allocation3 + $0x18] sm:$0xff] %v301
    %310 = vst [vmem:[#allocation3 + $0x20] sm:$0xff] %v302
    %311 = vst [vmem:[#allocation3 + $0x28] sm:$0xff] %v303
    %312 = vst [vmem:[#allocation3 + $0x30] sm:$0xff] %v304
    %313 = vst [vmem:[#allocation3 + $0x38] sm:$0xff] %v305
    %v314 = vld [vmem:[#allocation4] sm:$0xf]
    %v315 = vld [vmem:[#allocation4 + $0x4] sm:$0xf]
    %v316 = vld [vmem:[#allocation4 + $0x8] sm:$0xf]
    %v317 = vld [vmem:[#allocation4 + $0xc] sm:$0xf]
    %v318 = vld [vmem:[#allocation4 + $0x10] sm:$0xf]
    %v319 = vld [vmem:[#allocation4 + $0x14] sm:$0xf]
    %v320 = vld [vmem:[#allocation4 + $0x18] sm:$0xf]
    %v321 = vld [vmem:[#allocation4 + $0x1c] sm:$0xf]
    %v322 = vld [vmem:[#allocation4 + $0x20] sm:$0xf]
    %v323 = vld [vmem:[#allocation4 + $0x24] sm:$0xf]
    %v324 = vld [vmem:[#allocation4 + $0x28] sm:$0xf]
    %v325 = vld [vmem:[#allocation4 + $0x2c] sm:$0xf]
    %v326 = vld [vmem:[#allocation4 + $0x30] sm:$0xf]
    %v327 = vld [vmem:[#allocation4 + $0x34] sm:$0xf]
    %v328 = vld [vmem:[#allocation4 + $0x38] sm:$0xf]
    %v329 = vld [vmem:[#allocation4 + $0x3c] sm:$0xf]
    %v330 = vld [vmem:[#allocation3] sm:$0xff]
    %v331 = vld [vmem:[#allocation3 + $0x8] sm:$0xff]
    %v332 = vld [vmem:[#allocation3 + $0x10] sm:$0xff]
    %v333 = vld [vmem:[#allocation3 + $0x18] sm:$0xff]
    %v334 = vld [vmem:[#allocation3 + $0x20] sm:$0xff]
    %v335 = vld [vmem:[#allocation3 + $0x28] sm:$0xff]
    %v336 = vld [vmem:[#allocation3 + $0x30] sm:$0xff]
    %v337 = vld [vmem:[#allocation3 + $0x38] sm:$0xff]
    %v354 = vunpack.c.l.b16 %v314
    %v355 = vunpack.c.l.b16 %v315
    %v356 = vunpack.c.l.b16 %v316
    %v357 = vunpack.c.l.b16 %v317
    %v358 = vunpack.c.l.b16 %v318
    %v359 = vunpack.c.l.b16 %v319
    %v360 = vunpack.c.l.b16 %v320
    %v361 = vunpack.c.l.b16 %v321
    %v362 = vunpack.c.l.b16 %v322
    %v363 = vunpack.c.l.b16 %v323
    %v364 = vunpack.c.l.b16 %v324
    %v365 = vunpack.c.l.b16 %v325
    %v366 = vunpack.c.l.b16 %v326
    %v367 = vunpack.c.l.b16 %v327
    %v368 = vunpack.c.l.b16 %v328
    %v369 = vunpack.c.l.b16 %v329
    %v370 = vpack.c.b16 %v355, %v354
    %v371 = vpack.c.b16 %v357, %v356
    %v372 = vpack.c.b16 %v359, %v358
    %v373 = vpack.c.b16 %v361, %v360
    %v374 = vpack.c.b16 %v363, %v362
    %v375 = vpack.c.b16 %v365, %v364
    %v376 = vpack.c.b16 %v367, %v366
    %v377 = vpack.c.b16 %v369, %v368
    %386 = vmatprep.subr.bf16.mxu0 0
    %387 = vmatpush1.bf16.msra.mxu0 %v330
    %388 = vmatprep.subr.bf16.mxu0 0
    %389 = vmatpush1.bf16.msra.mxu0 %v331
    %390 = vmatprep.subr.bf16.mxu0 0
    %391 = vmatpush1.bf16.msra.mxu0 %v332
    %392 = vmatprep.subr.bf16.mxu0 0
    %393 = vmatpush1.bf16.msra.mxu0 %v333
    %394 = vmatprep.subr.bf16.mxu0 0
    %395 = vmatpush1.bf16.msra.mxu0 %v334
    %396 = vmatprep.subr.bf16.mxu0 0
    %397 = vmatpush1.bf16.msra.mxu0 %v335
    %398 = vmatprep.subr.bf16.mxu0 0
    %399 = vmatpush1.bf16.msra.mxu0 %v336
    %400 = vmatprep.subr.bf16.mxu0 0
    %401 = vmatpush1.bf16.msra.mxu0 %v337
    %402 = vmatprep.subr.bf16.mxu0 0
    %403 = vmatpush1.bf16.msra.mxu0 0
    %404 = vmatprep.subr.bf16.mxu0 0
    %405 = vmatpush1.bf16.msra.mxu0 0
    %406 = vmatprep.subr.bf16.mxu0 0
    %407 = vmatpush1.bf16.msra.mxu0 0
    %408 = vmatprep.subr.bf16.mxu0 0
    %409 = vmatpush1.bf16.msra.mxu0 0
    %410 = vmatprep.subr.bf16.mxu0 0
    %411 = vmatpush1.bf16.msra.mxu0 0
    %412 = vmatprep.subr.bf16.mxu0 0
    %413 = vmatpush1.bf16.msra.mxu0 0
    %414 = vmatprep.subr.bf16.mxu0 0
    %415 = vmatpush1.bf16.msra.mxu0 0
    %416 = vmatprep.subr.bf16.mxu0 0
    %417 = vmatpush1.bf16.msra.mxu0 0
    %418 = vmatprep.mubr.bf16.mxu0 0
    %419 = vmatmul.mubr.bf16.gmra.mrb[0].mxu0 %v370
    %v420 = vpop.f32.mrb[0].mxu0
    %v421 = vadd.f32 0.0, %v420
    %v422 = vpop.f32.mrb[0].mxu0
    %v423 = vpop.f32.mrb[0].mxu0
    %v424 = vadd.f32 0.0, %v423
    %v425 = vpop.f32.mrb[0].mxu0
    %426 = vmatprep.mubr.bf16.mxu0 0
    %427 = vmatmul.mubr.bf16.gmra.mrb[0].mxu0 %v371
    %v428 = vpop.f32.mrb[0].mxu0
    %v429 = vadd.f32 0.0, %v428
    %v430 = vpop.f32.mrb[0].mxu0
    %v431 = vpop.f32.mrb[0].mxu0
    %v432 = vadd.f32 0.0, %v431
    %v433 = vpop.f32.mrb[0].mxu0
    %434 = vmatprep.mubr.bf16.mxu0 0
    %435 = vmatmul.mubr.bf16.gmra.mrb[0].mxu0 %v372
    %v436 = vpop.f32.mrb[0].mxu0
    %v437 = vadd.f32 0.0, %v436
    %v438 = vpop.f32.mrb[0].mxu0
    %v439 = vpop.f32.mrb[0].mxu0
    %v440 = vadd.f32 0.0, %v439
    %v441 = vpop.f32.mrb[0].mxu0
    %442 = vmatprep.mubr.bf16.mxu0 0
    %443 = vmatmul.mubr.bf16.gmra.mrb[0].mxu0 %v373
    %v444 = vpop.f32.mrb[0].mxu0
    %v445 = vadd.f32 0.0, %v444
    %v446 = vpop.f32.mrb[0].mxu0
    %v447 = vpop.f32.mrb[0].mxu0
    %v448 = vadd.f32 0.0, %v447
    %v449 = vpop.f32.mrb[0].mxu0
    %450 = vmatprep.mubr.bf16.mxu0 0
    %451 = vmatmul.mubr.bf16.gmra.mrb[0].mxu0 %v374
    %v452 = vpop.f32.mrb[0].mxu0
    %v453 = vadd.f32 0.0, %v452
    %v454 = vpop.f32.mrb[0].mxu0
    %v455 = vpop.f32.mrb[0].mxu0
    %v456 = vadd.f32 0.0, %v455
    %v457 = vpop.f32.mrb[0].mxu0
    %458 = vmatprep.mubr.bf16.mxu0 0
    %459 = vmatmul.mubr.bf16.gmra.mrb[0].mxu0 %v375
    %v460 = vpop.f32.mrb[0].mxu0
    %v461 = vadd.f32 0.0, %v460
    %v462 = vpop.f32.mrb[0].mxu0
    %v463 = vpop.f32.mrb[0].mxu0
    %v464 = vadd.f32 0.0, %v463
    %v465 = vpop.f32.mrb[0].mxu0
    %466 = vmatprep.mubr.bf16.mxu0 0
    %467 = vmatmul.mubr.bf16.gmra.mrb[0].mxu0 %v376
    %v468 = vpop.f32.mrb[0].mxu0
    %v469 = vadd.f32 0.0, %v468
    %v470 = vpop.f32.mrb[0].mxu0
    %v471 = vpop.f32.mrb[0].mxu0
    %v472 = vadd.f32 0.0, %v471
    %v473 = vpop.f32.mrb[0].mxu0
    %474 = vmatprep.mubr.bf16.mxu0 0
    %475 = vmatmul.mubr.bf16.gmra.mrb[0].mxu0 %v377
    %v476 = vpop.f32.mrb[0].mxu0
    %v477 = vadd.f32 0.0, %v476
    %v478 = vpop.f32.mrb[0].mxu0
    %v479 = vpop.f32.mrb[0].mxu0
    %v480 = vadd.f32 0.0, %v479
    %v481 = vpop.f32.mrb[0].mxu0
    %482 = vdwg.mxu0
    %v483 = vpack.c.bf16 %v424, %v421
    %v484 = vpack.c.bf16 %v432, %v429
    %v485 = vpack.c.bf16 %v440, %v437
    %v486 = vpack.c.bf16 %v448, %v445
    %v487 = vpack.c.bf16 %v456, %v453
    %v488 = vpack.c.bf16 %v464, %v461
    %v489 = vpack.c.bf16 %v472, %v469
    %v490 = vpack.c.bf16 %v480, %v477
    %491 = vst [vmem:[#allocation2] sm:$0xff] %v483
    %492 = vst [vmem:[#allocation2 + $0x8] sm:$0xff] %v484
    %493 = vst [vmem:[#allocation2 + $0x10] sm:$0xff] %v485
    %494 = vst [vmem:[#allocation2 + $0x18] sm:$0xff] %v486
    %495 = vst [vmem:[#allocation2 + $0x20] sm:$0xff] %v487
    %496 = vst [vmem:[#allocation2 + $0x28] sm:$0xff] %v488
    %497 = vst [vmem:[#allocation2 + $0x30] sm:$0xff] %v489
    %498 = vst [vmem:[#allocation2 + $0x38] sm:$0xff] %v490
    %v499 = vld [vmem:[#allocation2] sm:$0xff]
    %v500 = vld [vmem:[#allocation2 + $0x8] sm:$0xff]
    %v501 = vld [vmem:[#allocation2 + $0x10] sm:$0xff]
    %v502 = vld [vmem:[#allocation2 + $0x18] sm:$0xff]
    %v503 = vld [vmem:[#allocation2 + $0x20] sm:$0xff]
    %v504 = vld [vmem:[#allocation2 + $0x28] sm:$0xff]
    %v505 = vld [vmem:[#allocation2 + $0x30] sm:$0xff]
    %v506 = vld [vmem:[#allocation2 + $0x38] sm:$0xff]
    %v507 = vld [vmem:[#allocation9] sm:$0xf]
    %v508 = vld [vmem:[#allocation9 + $0x4] sm:$0xf]
    %v509 = vld [vmem:[#allocation9 + $0x8] sm:$0xf]
    %v510 = vld [vmem:[#allocation9 + $0xc] sm:$0xf]
    %v511 = vld [vmem:[#allocation9 + $0x10] sm:$0xf]
    %v512 = vld [vmem:[#allocation9 + $0x14] sm:$0xf]
    %v513 = vld [vmem:[#allocation9 + $0x18] sm:$0xf]
    %v514 = vld [vmem:[#allocation9 + $0x1c] sm:$0xf]
    %v515 = vld [vmem:[#allocation9 + $0x20] sm:$0xf]
    %v516 = vld [vmem:[#allocation9 + $0x24] sm:$0xf]
    %v517 = vld [vmem:[#allocation9 + $0x28] sm:$0xf]
    %v518 = vld [vmem:[#allocation9 + $0x2c] sm:$0xf]
    %v519 = vld [vmem:[#allocation9 + $0x30] sm:$0xf]
    %v520 = vld [vmem:[#allocation9 + $0x34] sm:$0xf]
    %v521 = vld [vmem:[#allocation9 + $0x38] sm:$0xf]
    %v522 = vld [vmem:[#allocation9 + $0x3c] sm:$0xf]
    %v539 = vunpack.c.l.b16 %v507
    %v540 = vunpack.c.l.b16 %v508
    %v541 = vunpack.c.l.b16 %v509
    %v542 = vunpack.c.l.b16 %v510
    %v543 = vunpack.c.l.b16 %v511
    %v544 = vunpack.c.l.b16 %v512
    %v545 = vunpack.c.l.b16 %v513
    %v546 = vunpack.c.l.b16 %v514
    %v547 = vunpack.c.l.b16 %v515
    %v548 = vunpack.c.l.b16 %v516
    %v549 = vunpack.c.l.b16 %v517
    %v550 = vunpack.c.l.b16 %v518
    %v551 = vunpack.c.l.b16 %v519
    %v552 = vunpack.c.l.b16 %v520
    %v553 = vunpack.c.l.b16 %v521
    %v554 = vunpack.c.l.b16 %v522
    %v555 = vpack.c.b16 %v540, %v539
    %v556 = vpack.c.b16 %v542, %v541
    %v557 = vpack.c.b16 %v544, %v543
    %v558 = vpack.c.b16 %v546, %v545
    %v559 = vpack.c.b16 %v548, %v547
    %v560 = vpack.c.b16 %v550, %v549
    %v561 = vpack.c.b16 %v552, %v551
    %v562 = vpack.c.b16 %v554, %v553
    %571 = vmatprep.subr.bf16.mxu0 0
    %572 = vmatpush1.bf16.msra.mxu0 %v555
    %573 = vmatprep.subr.bf16.mxu0 0
    %574 = vmatpush1.bf16.msra.mxu0 %v556
    %575 = vmatprep.subr.bf16.mxu0 0
    %576 = vmatpush1.bf16.msra.mxu0 %v557
    %577 = vmatprep.subr.bf16.mxu0 0
    %578 = vmatpush1.bf16.msra.mxu0 %v558
    %579 = vmatprep.subr.bf16.mxu0 0
    %580 = vmatpush1.bf16.msra.mxu0 %v559
    %581 = vmatprep.subr.bf16.mxu0 0
    %582 = vmatpush1.bf16.msra.mxu0 %v560
    %583 = vmatprep.subr.bf16.mxu0 0
    %584 = vmatpush1.bf16.msra.mxu0 %v561
    %585 = vmatprep.subr.bf16.mxu0 0
    %586 = vmatpush1.bf16.msra.mxu0 %v562
    %587 = vmatprep.subr.bf16.mxu0 0
    %588 = vmatpush1.bf16.msra.mxu0 0
    %589 = vmatprep.subr.bf16.mxu0 0
    %590 = vmatpush1.bf16.msra.mxu0 0
    %591 = vmatprep.subr.bf16.mxu0 0
    %592 = vmatpush1.bf16.msra.mxu0 0
    %593 = vmatprep.subr.bf16.mxu0 0
    %594 = vmatpush1.bf16.msra.mxu0 0
    %595 = vmatprep.subr.bf16.mxu0 0
    %596 = vmatpush1.bf16.msra.mxu0 0
    %597 = vmatprep.subr.bf16.mxu0 0
    %598 = vmatpush1.bf16.msra.mxu0 0
    %599 = vmatprep.subr.bf16.mxu0 0
    %600 = vmatpush1.bf16.msra.mxu0 0
    %601 = vmatprep.subr.bf16.mxu0 0
    %602 = vmatpush1.bf16.msra.mxu0 0
    %603 = vmatprep.mubr.bf16.mxu0 0
    %604 = vmatmul.mubr.bf16.gmra.mrb[0].mxu0 %v499
    %v605 = vpop.f32.mrb[0].mxu0
    %v606 = vadd.f32 0.0, %v605
    %v607 = vpop.f32.mrb[0].mxu0
    %v608 = vpop.f32.mrb[0].mxu0
    %v609 = vadd.f32 0.0, %v608
    %v610 = vpop.f32.mrb[0].mxu0
    %611 = vmatprep.mubr.bf16.mxu0 0
    %612 = vmatmul.mubr.bf16.gmra.mrb[0].mxu0 %v500
    %v613 = vpop.f32.mrb[0].mxu0
    %v614 = vadd.f32 0.0, %v613
    %v615 = vpop.f32.mrb[0].mxu0
    %v616 = vpop.f32.mrb[0].mxu0
    %v617 = vadd.f32 0.0, %v616
    %v618 = vpop.f32.mrb[0].mxu0
    %619 = vmatprep.mubr.bf16.mxu0 0
    %620 = vmatmul.mubr.bf16.gmra.mrb[0].mxu0 %v501
    %v621 = vpop.f32.mrb[0].mxu0
    %v622 = vadd.f32 0.0, %v621
    %v623 = vpop.f32.mrb[0].mxu0
    %v624 = vpop.f32.mrb[0].mxu0
    %v625 = vadd.f32 0.0, %v624
    %v626 = vpop.f32.mrb[0].mxu0
    %627 = vmatprep.mubr.bf16.mxu0 0
    %628 = vmatmul.mubr.bf16.gmra.mrb[0].mxu0 %v502
    %v629 = vpop.f32.mrb[0].mxu0
    %v630 = vadd.f32 0.0, %v629
    %v631 = vpop.f32.mrb[0].mxu0
    %v632 = vpop.f32.mrb[0].mxu0
    %v633 = vadd.f32 0.0, %v632
    %v634 = vpop.f32.mrb[0].mxu0
    %635 = vmatprep.mubr.bf16.mxu0 0
    %636 = vmatmul.mubr.bf16.gmra.mrb[0].mxu0 %v503
    %v637 = vpop.f32.mrb[0].mxu0
    %v638 = vadd.f32 0.0, %v637
    %v639 = vpop.f32.mrb[0].mxu0
    %v640 = vpop.f32.mrb[0].mxu0
    %v641 = vadd.f32 0.0, %v640
    %v642 = vpop.f32.mrb[0].mxu0
    %643 = vmatprep.mubr.bf16.mxu0 0
    %644 = vmatmul.mubr.bf16.gmra.mrb[0].mxu0 %v504
    %v645 = vpop.f32.mrb[0].mxu0
    %v646 = vadd.f32 0.0, %v645
    %v647 = vpop.f32.mrb[0].mxu0
    %v648 = vpop.f32.mrb[0].mxu0
    %v649 = vadd.f32 0.0, %v648
    %v650 = vpop.f32.mrb[0].mxu0
    %651 = vmatprep.mubr.bf16.mxu0 0
    %652 = vmatmul.mubr.bf16.gmra.mrb[0].mxu0 %v505
    %v653 = vpop.f32.mrb[0].mxu0
    %v654 = vadd.f32 0.0, %v653
    %v655 = vpop.f32.mrb[0].mxu0
    %v656 = vpop.f32.mrb[0].mxu0
    %v657 = vadd.f32 0.0, %v656
    %v658 = vpop.f32.mrb[0].mxu0
    %659 = vmatprep.mubr.bf16.mxu0 0
    %660 = vmatmul.mubr.bf16.gmra.mrb[0].mxu0 %v506
    %v661 = vpop.f32.mrb[0].mxu0
    %v662 = vadd.f32 0.0, %v661
    %v663 = vpop.f32.mrb[0].mxu0
    %v664 = vpop.f32.mrb[0].mxu0
    %v665 = vadd.f32 0.0, %v664
    %v666 = vpop.f32.mrb[0].mxu0
    %667 = vdwg.mxu0
    %668 = vst [vmem:[#allocation10] sm:$0xff] %v606
    %669 = vst [vmem:[#allocation10 + $0x8] sm:$0xff] %v609
    %670 = vst [vmem:[#allocation10 + $0x10] sm:$0xff] %v614
    %671 = vst [vmem:[#allocation10 + $0x18] sm:$0xff] %v617
    %672 = vst [vmem:[#allocation10 + $0x20] sm:$0xff] %v622
    %673 = vst [vmem:[#allocation10 + $0x28] sm:$0xff] %v625
    %674 = vst [vmem:[#allocation10 + $0x30] sm:$0xff] %v630
    %675 = vst [vmem:[#allocation10 + $0x38] sm:$0xff] %v633
    %676 = vst [vmem:[#allocation10 + $0x40] sm:$0xff] %v638
    %677 = vst [vmem:[#allocation10 + $0x48] sm:$0xff] %v641
    %678 = vst [vmem:[#allocation10 + $0x50] sm:$0xff] %v646
    %679 = vst [vmem:[#allocation10 + $0x58] sm:$0xff] %v649
    %680 = vst [vmem:[#allocation10 + $0x60] sm:$0xff] %v654
    %681 = vst [vmem:[#allocation10 + $0x68] sm:$0xff] %v657
    %682 = vst [vmem:[#allocation10 + $0x70] sm:$0xff] %v662
    %683 = vst [vmem:[#allocation10 + $0x78] sm:$0xff] %v665
    // Predicated region
    $region26: #{tpu_custom_call.1} parent=1 // pred_check
      _
    $region27: #{tpu_custom_call.1} parent=1 // pred_check_branch
      %685 = sbr.rel (0) target = $region29
    $region28: #{tpu_custom_call.1} parent=1 // pred_region
      %s687 = ssub.s32 2048, 2048
      %688 = vsyncadd [#allocation6], %s687
      %s689 = sshll.u32 [#allocation10], 4
      %s690 = int_to_ptr.vmem [resolvable:$true] %s689
      %695 = dma.vmem_to_hbm [thread:$0]  %s690, 2048, %s3, [#allocation6], 128, 128, 8
    $region29: #{tpu_custom_call.1} parent=1 // pred_fallthru
      _
    // Predicated region
    $region30: #{tpu_custom_call.1} parent=1 // pred_check
      _
    $region31: #{tpu_custom_call.1} parent=1 // pred_check_branch
      %697 = sbr.rel (0) target = $region33
    $region32: #{tpu_custom_call.1} parent=1 // pred_region
      %698 = dma.done [#allocation6], 2048
    $region33: #{tpu_custom_call.1} parent=1 // pred_fallthru
      _
    %699 = vsyncpa [#allocation5], 1
    %700 = vsyncpa [#allocation8], 1
    %701 = vsyncpa [#allocation6], 1

</llo_original>
